<compile_context>
chip_gen: v5e
topology: v5e:2x2
jax: 0.10.0
libtpu: 0.0.40
codegen_flags: <defaults>
</compile_context>

<pallas_src>
import jax
import jax.numpy as jnp
from jax.experimental import pallas as pl
from jax.experimental.pallas import tpu as pltpu


_LANE = 128
_SUBLANE = 8
# Budget for ONE input block.  Input + output blocks are each double-buffered
# (~4x this in VMEM) plus f32 intermediates, which stays well inside the
# scoped VMEM limit on v5e/v6e/v7x while still giving 512+ lane tiles for
# typical softmax-axis sizes.
_BLOCK_BUDGET_BYTES = 2 * 1024 * 1024
_VMEM_LIMIT_BYTES = 32 * 1024 * 1024


def _softmax_lastaxis_kernel(x_ref, o_ref):
    # x_ref / o_ref: (TM, K) — softmax along the lane axis.
    x = x_ref[...].astype(jnp.float32)
    m = jnp.max(x, axis=-1, keepdims=True)
    e = jnp.exp(x - m)
    s = jnp.sum(e, axis=-1, keepdims=True)
    o_ref[...] = (e / s).astype(o_ref.dtype)


def _softmax_midaxis_kernel(x_ref, o_ref):
    # x_ref / o_ref: (1, K, TN) — softmax along axis 1; lanes (post) stay dense.
    x = x_ref[...].astype(jnp.float32)
    m = jnp.max(x, axis=1, keepdims=True)
    e = jnp.exp(x - m)
    s = jnp.sum(e, axis=1, keepdims=True)
    o_ref[...] = (e / s).astype(o_ref.dtype)


def _pick_tile(total, bytes_per_unit, quantum):
    """Largest tile (multiple of `quantum`, or the full extent) within budget."""
    cap = (_BLOCK_BUDGET_BYTES // max(bytes_per_unit, 1)) // quantum * quantum
    cap = max(cap, quantum)
    if total <= cap:
        return total  # full extent is always a legal block dim
    return cap


def softmax_layer_pallas(x, dimA):
    """Pallas equivalent of nn.functional.softmax(x, dim=dimA)."""
    ndim = x.ndim
    dimA = dimA % ndim
    shape = x.shape
    K = shape[dimA]
    pre = 1
    for s in shape[:dimA]:
        pre *= s
    post = 1
    for s in shape[dimA + 1:]:
        post *= s
    itemsize = jnp.dtype(x.dtype).itemsize
    # TODO(synk): for extremely large K (block > budget at 128 lanes), split K
    # over an "arbitrary" grid axis with an online (running max/sum) softmax.

    if post == 1:
        # Softmax along the (flattened) last axis: view (M, K), reduce lanes.
        M = pre
        x2d = x.reshape(M, K)
        tm = _pick_tile(M, K * itemsize, _SUBLANE)
        grid = (pl.cdiv(M, tm),)
        out2d = pl.pallas_call(
            _softmax_lastaxis_kernel,
            out_shape=jax.ShapeDtypeStruct((M, K), x.dtype),
            grid=grid,
            in_specs=[pl.BlockSpec((tm, K), lambda i: (i, 0))],
            out_specs=pl.BlockSpec((tm, K), lambda i: (i, 0)),
            compiler_params=pltpu.CompilerParams(
                dimension_semantics=("parallel",),
                vmem_limit_bytes=_VMEM_LIMIT_BYTES,
            ),
        )(x2d)
        return out2d.reshape(shape)

    # General case: contiguous reshape to (pre, K, post) — no transpose, no
    # pad.  Reduce the softmax axis K inside the kernel; the kept `post` axis
    # maps to lanes so every load/store is lane-dense.
    x3d = x.reshape(pre, K, post)
    tn = _pick_tile(post, K * itemsize, _LANE)
    grid = (pre, pl.cdiv(post, tn))
    out3d = pl.pallas_call(
        _softmax_midaxis_kernel,
        out_shape=jax.ShapeDtypeStruct((pre, K, post), x.dtype),
        grid=grid,
        in_specs=[pl.BlockSpec((1, K, tn), lambda i, j: (i, 0, j))],
        out_specs=pl.BlockSpec((1, K, tn), lambda i, j: (i, 0, j)),
        compiler_params=pltpu.CompilerParams(
            dimension_semantics=("parallel", "parallel"),
            vmem_limit_bytes=_VMEM_LIMIT_BYTES,
        ),
    )(x3d)
    return out3d.reshape(shape)


if __name__ == "__main__":
    key = jax.random.PRNGKey(0)
    # Small NCHW-style input: batch=2, channels=4, spatial=16x16
    x = jax.random.normal(key, (2, 4, 16, 16), dtype=jnp.float32)
    dimA = 1  # softmax over the channel dimension

    out = softmax_layer_pallas(x, dimA)
    out = jax.block_until_ready(out)

    # Reference (mirrors torch.nn.functional.softmax(x, dim=dimA))
    ref = jax.nn.softmax(x, axis=dimA)
    assert out.shape == ref.shape, (out.shape, ref.shape)
    assert jnp.allclose(out, ref, atol=1e-6, rtol=1e-6), "mismatch vs reference softmax"

    print("KERNEL_OK")
</pallas_src>

<mosaic_0001>
module attributes {stable_mosaic.version = 11 : i64} {
  func.func @_softmax_midaxis_kernel(%arg0: i32, %arg1: i32, %arg2: memref<1x4x256xf32, #tpu.memory_space<vmem>>, %arg3: memref<1x4x256xf32, #tpu.memory_space<vmem>>) attributes {dimension_semantics = [#tpu.dimension_semantics<parallel>, #tpu.dimension_semantics<parallel>], iteration_bounds = array<i64: 2, 1>, scalar_prefetch = 0 : i64, scratch_operands = 0 : i64, tpu.core_type = #tpu.core_type<tc>, window_params = [{transform_indices = @transform_0, window_bounds = array<i64: 1, 4, 256>}, {transform_indices = @transform_1, window_bounds = array<i64: 1, 4, 256>}]} {
    %c0 = arith.constant 0 : index
    %c0_0 = arith.constant 0 : index
    %c0_1 = arith.constant 0 : index
    %0 = vector.load %arg2[%c0, %c0_0, %c0_1] : memref<1x4x256xf32, #tpu.memory_space<vmem>>, vector<1x4x256xf32>
    %cst = arith.constant dense<0xFF800000> : vector<1x256xf32>
    %1 = vector.multi_reduction <maximumf>, %0, %cst [1] : vector<1x4x256xf32> to vector<1x256xf32>
    %2 = vector.shape_cast %1 : vector<1x256xf32> to vector<1x1x256xf32>
    %3 = vector.broadcast %2 : vector<1x1x256xf32> to vector<1x4x256xf32>
    %4 = arith.subf %0, %3 : vector<1x4x256xf32>
    %5 = math.exp %4 : vector<1x4x256xf32>
    %cst_2 = arith.constant dense<0.000000e+00> : vector<1x256xf32>
    %6 = vector.multi_reduction <add>, %5, %cst_2 [1] : vector<1x4x256xf32> to vector<1x256xf32>
    %7 = vector.shape_cast %6 : vector<1x256xf32> to vector<1x1x256xf32>
    %8 = vector.broadcast %7 : vector<1x1x256xf32> to vector<1x4x256xf32>
    %9 = arith.divf %5, %8 : vector<1x4x256xf32>
    %c0_3 = arith.constant 0 : index
    %c0_4 = arith.constant 0 : index
    %c0_5 = arith.constant 0 : index
    %10 = vector.load %arg3[%c0_3, %c0_4, %c0_5] : memref<1x4x256xf32, #tpu.memory_space<vmem>>, vector<1x4x256xf32>
    tpu.vector_store %arg3[%c0_3, %c0_4, %c0_5], %9 {strides = array<i32>} : memref<1x4x256xf32, #tpu.memory_space<vmem>>, vector<1x4x256xf32>,
    return
  }
  func.func @transform_0(%arg0: i32, %arg1: i32) -> (i32, i32, i32) {
    %c0_i32 = arith.constant 0 : i32
    %c0_i32_0 = arith.constant 0 : i32
    return %arg0, %c0_i32, %arg1 : i32, i32, i32
  }
  func.func @transform_1(%arg0: i32, %arg1: i32) -> (i32, i32, i32) {
    %c0_i32 = arith.constant 0 : i32
    %c0_i32_0 = arith.constant 0 : i32
    return %arg0, %c0_i32, %arg1 : i32, i32, i32
  }
}

</mosaic_0001>

<llo_original>
// kernel: tpu_custom_call.1
$region0: #{tpu_custom_call.1}
  #allocation0 [shape = 'u32[]', space=smem, size = 0x4, offset = 0x4, fixed_abs, tag = 'smem constant byte address 0x4 - core index']
  #allocation1 [shape = 'u32[72,128]{1,0:T(1,128)}', space=vmem, size = 0x9000, scoped, tag = 'internal scratch']
  %s0 = inlined_call_operand.hbm [shape: f32[2,4,256], index: 0, kind: input, shape index: {}]
  %s1 = inlined_call_operand.hbm [shape: f32[2,4,256], index: 1, kind: output, shape index: {}]
  %s2 = sld [smem:[#allocation0]]
  $region41: #{tpu_custom_call.1} parent=0
    _
  %s4 = ssub.s32 1, %s2
  %s5 = scalar_select 0, %s4, %s2
  $region1: #{tpu_custom_call.1} parent=0
    #allocation2 [shape = 'u8[8192]{0}', space=vmem, size = 0x2000, scoped, tag = 'input window, operand 0']
    #allocation3 [shape = 's32[2]{0}', space=sflag, size = 0x8, scoped, tag = 'scoped memory for tpu_custom_call.1']
    #allocation4 [shape = 's32[2]{0}', space=sflag, size = 0x8, scoped, tag = 'scoped memory for tpu_custom_call.1']
    #allocation5 [shape = 'u8[8192]{0}', space=vmem, size = 0x2000, scoped, tag = 'output window, operand 0']
    %6 = vsyncpa [#allocation3], 0
    %s7 = scalar_lea.sflag [#allocation3], 1
    %8 = vsyncpa %s7, 0
    %9 = vsyncpa [#allocation4], 0
    %s10 = scalar_lea.sflag [#allocation4], 1
    %11 = vsyncpa %s10, 0
    loop: start=0, step=1, limit=4
    $region2: #{tpu_custom_call.1} parent=1 // loop_pre_header
      _
    $region3: #{tpu_custom_call.1} parent=1 // loop_header
      %s13 = sphi 0, %s17
      %p14 = scmp.ge.s32.totalorder %s13, 4
      %s20 = sphi 0, %s32
      %s21 = sphi 0, %s28
      %s22 = sphi 0, %s20
      %s23 = sphi 0, %s21
      %s24 = sphi 0, %s22
      %s25 = sphi 0, %s23
      %s37 = sphi 0, %s39
      %s40 = sphi 0, %s37
      %s41 = sphi 0, %s40
      %s57 = sphi 0, %s41
      %s65 = sphi 0, %s67
      %s68 = sphi 0, %s65
      %s69 = sphi 0, %s68
      %s85 = sphi 0, %s69
    $region4: #{tpu_custom_call.1} parent=1 // loop_header_branch
      %16 = sbr.rel (%p14) target = $region8
    $region5: #{tpu_custom_call.1} parent=1 // loop_body
      %s18 = ssub.s32 %s13, 1
      %s19 = ssub.s32 %s13, 2
      %s26 = sadd.s32 1, %s21
      %p27 = scmp.ge.s32.totalorder %s26, 1
      %s28 = scalar_select %p27, 0, %s26
      %s29 = sadd.s32 1, %s20
      %s30 = scalar_select %p27, %s29, %s20
      %p31 = scmp.ge.s32.totalorder %s30, 2
      %s32 = scalar_select %p31, 0, %s30
      %s33 = ssub.s32 %s20, %s32
      %s34 = ssub.s32 %s21, %s28
      %s35 = sor.u32 %s33, %s34
      %p36 = scmp.eq.s32.totalorder %s35, 0
      %s38 = sadd.s32 %s37, 1
      %s39 = scalar_select %p36, %s37, %s38
      %p42 = pneg %p36
      %p43 = scmp.eq.s32.totalorder %s13, 1
      %p44 = por %p42, %p43
      %p45 = scmp.ne.s32.totalorder %s37, %s40
      %p46 = scmp.eq.s32.totalorder %s13, 0
      %p47 = por %p45, %p46
      %p48 = scmp.ne.s32.totalorder %s37, %s40
      %p49 = scmp.eq.s32.totalorder %s18, 1
      %p50 = por %p48, %p49
      %p51 = scmp.ne.s32.totalorder %s40, %s41
      %p52 = scmp.eq.s32.totalorder %s18, 0
      %p53 = por %p51, %p52
      %p54 = scmp.ne.s32.totalorder %s40, %s41
      %p55 = scmp.eq.s32.totalorder %s19, 1
      %p56 = por %p54, %p55
      %p58 = scmp.ne.s32.totalorder %s41, %s57
      %p59 = scmp.eq.s32.totalorder %s19, 0
      %p60 = por %p58, %p59
      %s61 = ssub.s32 %s20, %s32
      %s62 = ssub.s32 %s21, %s28
      %s63 = sor.u32 %s61, %s62
      %p64 = scmp.eq.s32.totalorder %s63, 0
      %s66 = sadd.s32 %s65, 1
      %s67 = scalar_select %p64, %s65, %s66
      %p70 = pneg %p64
      %p71 = scmp.eq.s32.totalorder %s13, 1
      %p72 = por %p70, %p71
      %p73 = scmp.ne.s32.totalorder %s65, %s68
      %p74 = scmp.eq.s32.totalorder %s13, 0
      %p75 = por %p73, %p74
      %p76 = scmp.ne.s32.totalorder %s65, %s68
      %p77 = scmp.eq.s32.totalorder %s18, 1
      %p78 = por %p76, %p77
      %p79 = scmp.ne.s32.totalorder %s68, %s69
      %p80 = scmp.eq.s32.totalorder %s18, 0
      %p81 = por %p79, %p80
      %p82 = scmp.ne.s32.totalorder %s68, %s69
      %p83 = scmp.eq.s32.totalorder %s19, 1
      %p84 = por %p82, %p83
      %p86 = scmp.ne.s32.totalorder %s69, %s85
      %p87 = scmp.eq.s32.totalorder %s19, 0
      %p88 = por %p86, %p87
      %p89 = scmp.le.s32.totalorder 1, %s13
      %p90 = scmp.lt.s32.totalorder %s13, 3
      %p91 = pnand %p89, %p90
      %p92 = pneg %p91
      // Predicated region
      $region9: #{tpu_custom_call.1} parent=5 // pred_check
        _
      $region10: #{tpu_custom_call.1} parent=5 // pred_check_branch
        %94 = sbr.rel (%p91) target = $region12
      $region11: #{tpu_custom_call.1} parent=5 // pred_region
        %s95 = ssub.s32 %s13, 1
      $region12: #{tpu_custom_call.1} parent=5 // pred_fallthru
        _
      %p96 = scmp.lt.s32.totalorder %s13, 2
      // Predicated region
      $region13: #{tpu_custom_call.1} parent=5 // pred_check
        %p97 = pneg %p96
      $region14: #{tpu_custom_call.1} parent=5 // pred_check_branch
        %99 = sbr.rel (%p97) target = $region16
      $region15: #{tpu_custom_call.1} parent=5 // pred_region
        // Predicated region
        $region17: #{tpu_custom_call.1} parent=15 // pred_check
          %p100 = pneg %p47
        $region18: #{tpu_custom_call.1} parent=15 // pred_check_branch
          %102 = sbr.rel (%p100) target = $region20
        $region19: #{tpu_custom_call.1} parent=15 // pred_region
          %s103 = sand.u32 %s37, 1
          %s104 = scalar_lea.sflag [#allocation3], %s103
          %s105 = sand.u32 %s37, 1
          %s106 = smul.addr %s105, 8
          %s107 = scalar_lea.vmem [#allocation2], %s106
          %s108 = smul.u32 2, %s21
          %110 = vsyncadd %s104, 0
          %s111 = smul.addr %s20, 2
          %s112 = sadd.s32 %s108, %s111
          %s113 = smul.addr %s112, 4
          %s114 = scalar_lea.hbm %s0, %s113
          %s116 = sshll.u32 %s114, 4
          %s117 = int_to_ptr.hbm [resolvable:$true] %s116
          %s118 = sshll.u32 %s107, 4
          %s119 = int_to_ptr.vmem [resolvable:$true] %s118
          %121 = dma.hbm_to_vmem [thread:$0]  %s117, 128, %s119, %s104
        $region20: #{tpu_custom_call.1} parent=15 // pred_fallthru
          _
      $region16: #{tpu_custom_call.1} parent=5 // pred_fallthru
        _
      %p122 = scmp.le.s32.totalorder 1, %s13
      %p123 = scmp.lt.s32.totalorder %s13, 3
      %p124 = pnand %p122, %p123
      %p125 = pneg %p124
      // Predicated region
      $region21: #{tpu_custom_call.1} parent=5 // pred_check
        _
      $region22: #{tpu_custom_call.1} parent=5 // pred_check_branch
        %127 = sbr.rel (%p124) target = $region24
      $region23: #{tpu_custom_call.1} parent=5 // pred_region
        %s128 = ssub.s32 %s13, 1
        %s129 = sand.u32 %s40, 1
        %s130 = scalar_lea.sflag [#allocation3], %s129
        %s131 = sand.u32 %s40, 1
        %s132 = smul.addr %s131, 8
        %s133 = scalar_lea.vmem [#allocation2], %s132
        // Predicated region
        $region25: #{tpu_custom_call.1} parent=23 // pred_check
          %p134 = pneg %p53
        $region26: #{tpu_custom_call.1} parent=23 // pred_check_branch
          %136 = sbr.rel (%p134) target = $region28
        $region27: #{tpu_custom_call.1} parent=23 // pred_region
          %138 = dma.done %s130, 128
        $region28: #{tpu_custom_call.1} parent=23 // pred_fallthru
          _
        %s139 = sand.u32 %s40, 1
        %s140 = scalar_lea.sflag [#allocation3], %s139
        %s141 = sand.u32 %s40, 1
        %s142 = smul.addr %s141, 8
        %s143 = scalar_lea.vmem [#allocation2], %s142
        %p144 = pneg %p53
        %p145 = pneg %p50
        %p146 = pneg %p81
        %p147 = pneg %p78
        %s148 = sand.u32 %s68, 1
        %s149 = scalar_lea.sflag [#allocation4], %s148
        %s150 = sand.u32 %s68, 1
        %s151 = smul.addr %s150, 8
        %s152 = scalar_lea.vmem [#allocation5], %s151
        %s153 = smul.u32 2, %s23
        %s154 = smul.u32 2, %s23
        %v155 = vld [vmem:[%s133] sm:$0xff]
        %157 = vst [vmem:[#allocation1] ss:$2 sm:$0xff] %v155
        %v158 = vld.sshfl [vmem:[#allocation1] sm:$0xff pattern:$0x75316420]
        %v159 = vld.sshfl [vmem:[#allocation1 + $0x8] sm:$0xff pattern:$0x75316420]
        %vm162 = vcmask 1043456
        %v163 = vsel %vm162, %v158, -inf
        %v164 = vrot.slane %v163, 4
        %v165 = vmax.f32 %v163, %v164
        %v166 = vrot.slane %v165, 2
        %v167 = vmax.f32 %v165, %v166
        %v168 = vrot.slane %v167, 1
        %v169 = vmax.f32 %v167, %v168
        %v170 = vsel %vm162, %v159, -inf
        %v171 = vrot.slane %v170, 4
        %v172 = vmax.f32 %v170, %v171
        %v173 = vrot.slane %v172, 2
        %v174 = vmax.f32 %v172, %v173
        %v175 = vrot.slane %v174, 1
        %v176 = vmax.f32 %v174, %v175
        %v179 = vrot.slane %v176, 4
        %v180 = vsel %vm162, %v169, %v179
        %v182 = vsub.f32 %v155, %v180
        %v183 = vmul.f32 %v182, 1.442695
        %v184 = vpow.pop %v183
        %186 = vst [vmem:[#allocation1] ss:$2 sm:$0xff] %v184
        %v187 = vld.sshfl [vmem:[#allocation1] sm:$0xff pattern:$0x75316420]
        %v188 = vld.sshfl [vmem:[#allocation1 + $0x8] sm:$0xff pattern:$0x75316420]
        %v191 = vsel %vm162, %v187, 0.0
        %v192 = vrot.slane %v191, 4
        %v193 = vadd.f32 %v191, %v192
        %v194 = vrot.slane %v193, 2
        %v195 = vadd.f32 %v193, %v194
        %v196 = vrot.slane %v195, 1
        %v197 = vadd.f32 %v195, %v196
        %v198 = vsel %vm162, %v188, 0.0
        %v199 = vrot.slane %v198, 4
        %v200 = vadd.f32 %v198, %v199
        %v201 = vrot.slane %v200, 2
        %v202 = vadd.f32 %v200, %v201
        %v203 = vrot.slane %v202, 1
        %v204 = vadd.f32 %v202, %v203
        %v207 = vrot.slane %v204, 4
        %v208 = vsel %vm162, %v197, %v207
        %v210 = vrcp.pop %v208
        %v211 = vmul.f32 %v208, %v210
        %v212 = vsub.f32 1.0, %v211
        %v213 = vmul.f32 %v210, %v212
        %v214 = vadd.f32 %v210, %v213
        %vm215 = vweird.f32 %v208
        %vm216 = vweird.f32 %v210
        %vm217 = vmor %vm215, %vm216
        %v218 = vsel %vm217, %v210, %v214
        %v219 = vand.u32 2147483647, %v208
        %vm220 = vcmp.eq.f32.partialorder %v219, 8.507059e+37
        %v221 = vand.u32 %v208, 2147483648
        %v222 = vor.u32 1.1754944e-38, %v221
        %v223 = vsel %vm220, %v222, %v218
        %v224 = vmul.f32 %v184, %v223
        %225 = vst [vmem:[%s152] sm:$0xff] %v224
        %s226 = sand.u32 %s68, 1
        %s227 = scalar_lea.sflag [#allocation4], %s226
        %s228 = sand.u32 %s68, 1
        %s229 = smul.addr %s228, 8
        %s230 = scalar_lea.vmem [#allocation5], %s229
        // Predicated region
        $region29: #{tpu_custom_call.1} parent=23 // pred_check
          %p231 = pneg %p78
        $region30: #{tpu_custom_call.1} parent=23 // pred_check_branch
          %233 = sbr.rel (%p231) target = $region32
        $region31: #{tpu_custom_call.1} parent=23 // pred_region
          %s234 = smul.u32 2, %s23
          %236 = vsyncadd %s227, 0
          %s237 = smul.addr %s22, 2
          %s238 = sadd.s32 %s234, %s237
          %s239 = smul.addr %s238, 4
          %s240 = scalar_lea.hbm %s1, %s239
          %s242 = sshll.u32 %s230, 4
          %s243 = int_to_ptr.vmem [resolvable:$true] %s242
          %s244 = sshll.u32 %s240, 4
          %s245 = int_to_ptr.hbm [resolvable:$true] %s244
          %247 = dma.vmem_to_hbm [thread:$0]  %s243, 128, %s245, %s227
        $region32: #{tpu_custom_call.1} parent=23 // pred_fallthru
          _
      $region24: #{tpu_custom_call.1} parent=5 // pred_fallthru
        _
      %p248 = scmp.le.s32.totalorder 2, %s13
      // Predicated region
      $region33: #{tpu_custom_call.1} parent=5 // pred_check
        %p249 = pneg %p248
      $region34: #{tpu_custom_call.1} parent=5 // pred_check_branch
        %251 = sbr.rel (%p249) target = $region36
      $region35: #{tpu_custom_call.1} parent=5 // pred_region
        %s252 = ssub.s32 %s13, 2
        // Predicated region
        $region37: #{tpu_custom_call.1} parent=35 // pred_check
          %p253 = pneg %p84
        $region38: #{tpu_custom_call.1} parent=35 // pred_check_branch
          %255 = sbr.rel (%p253) target = $region40
        $region39: #{tpu_custom_call.1} parent=35 // pred_region
          %s256 = sand.u32 %s69, 1
          %s257 = scalar_lea.sflag [#allocation4], %s256
          %s258 = sand.u32 %s69, 1
          %s259 = smul.addr %s258, 8
          %s260 = scalar_lea.vmem [#allocation5], %s259
          %262 = dma.done %s257, 128
        $region40: #{tpu_custom_call.1} parent=35 // pred_fallthru
          _
      $region36: #{tpu_custom_call.1} parent=5 // pred_fallthru
        _
    $region6: #{tpu_custom_call.1} parent=1 // loop_footer
      %s17 = sadd.s32 1, %s13
    $region7: #{tpu_custom_call.1} parent=1 // loop_footer_branch
      %12 = sbr.rel target = $region3
    $region8: #{tpu_custom_call.1} parent=1 // loop_exit
      _
    %263 = vsyncpa [#allocation3], 1
    %s264 = scalar_lea.sflag [#allocation3], 1
    %265 = vsyncpa %s264, 1
    %266 = vsyncpa [#allocation4], 1
    %s267 = scalar_lea.sflag [#allocation4], 1
    %268 = vsyncpa %s267, 1

</llo_original>
